<compile_context>
chip_gen: v7x
topology: tpu7x:2x2x1
jax: 0.10.0
libtpu: 0.0.40
codegen_flags: <defaults>
</compile_context>

<pallas_src>
import jax
import jax.numpy as jnp
from jax.experimental import pallas as pl
from jax.experimental.pallas import tpu as pltpu


def _identity_kernel(x_ref, o_ref):
    # Identity projection: out = x (whole VMEM tile copy).
    o_ref[...] = x_ref[...]


# Minimum sublane multiple per element byte-width: f32 -> 8, bf16 -> 16, int8/fp8 -> 32.
_MIN_SUBLANE = {4: 8, 2: 16, 1: 32}

# ~2 MiB per block/buffer: near HBM roofline for a copy, VMEM-safe even on v7x.
_TARGET_BLOCK_BYTES = 2 * 1024 * 1024


def _pick_lanes(total_elems):
    """Largest lane-dense last dim (multiple of 128) that evenly divides the flat size."""
    for lanes in (2048, 1024, 512, 256, 128):
        if total_elems % lanes == 0:
            return lanes
    return None


def embed_features(x: jnp.ndarray) -> jnp.ndarray:
    """Optimal EmbedFeatures.forward: proj == nn.Identity => literal pass-through."""
    return x


@jax.jit
def embed_features_pallas(x: jnp.ndarray) -> jnp.ndarray:
    """Identity as an explicit Pallas copy kernel (API symmetry / fusion boundary)."""
    total = x.size
    lanes = _pick_lanes(total)
    if lanes is None:
        # TODO(synk): element count not a multiple of 128 -> no lane-dense 2D view;
        # fall back to the optimal pure pass-through.
        return x

    rows = total // lanes
    itemsize = jnp.dtype(x.dtype).itemsize
    sublane = _MIN_SUBLANE.get(itemsize, 8)

    target_rows = max(sublane, _TARGET_BLOCK_BYTES // (lanes * itemsize))
    if rows <= target_rows:
        # One big block covering all rows (block == full array dim is always legal).
        block_rows = rows
    else:
        # Multiple blocks: keep rows-per-block a sublane multiple; final partial
        # block (if rows % block_rows != 0) is handled by the cdiv grid.
        block_rows = max(sublane, (target_rows // sublane) * sublane)

    x2 = x.reshape(rows, lanes)
    grid = (pl.cdiv(rows, block_rows),)
    spec = pl.BlockSpec((block_rows, lanes), lambda i: (i, 0))

    y2 = pl.pallas_call(
        _identity_kernel,
        out_shape=jax.ShapeDtypeStruct((rows, lanes), x.dtype),
        grid=grid,
        in_specs=[spec],
        out_specs=spec,
        input_output_aliases={0: 0},  # output HBM buffer aliases the input buffer
        compiler_params=pltpu.CompilerParams(
            dimension_semantics=("parallel",),  # shards across both TCs on v7x
        ),
    )(x2)
    return y2.reshape(x.shape)


class EmbedFeaturesPallas:
    """Mirror of the PyTorch module: proj == nn.Identity, so no parameters."""

    def __init__(self, num_features: int, embed_dim: int = 512, use_pallas_kernel: bool = True):
        self.num_patches = num_features
        self.embed_dim = embed_dim
        # nn.Identity() has no weights -> nothing to initialize.
        self.use_pallas_kernel = use_pallas_kernel

    def __call__(self, x: jnp.ndarray) -> jnp.ndarray:
        if self.use_pallas_kernel:
            return embed_features_pallas(x)
        return embed_features(x)  # strictly fastest: no kernel, no copy


if __name__ == "__main__":
    key = jax.random.PRNGKey(0)
    B, N, D = 2, 8, 512  # batch=2, tokens=8, embed_dim=512 (module default)
    x = jax.random.normal(key, (B, N, D), dtype=jnp.float32)

    module = EmbedFeaturesPallas(num_features=N, embed_dim=D)
    out = jax.block_until_ready(module(x))

    assert out.shape == x.shape and out.dtype == x.dtype
    assert bool(jnp.array_equal(out, x))

    # The recommended fast path is a literal pass-through (zero HBM traffic).
    assert embed_features(x) is x

    # Awkward token count (ViT-B/16 with CLS token: N=197) now works too.
    x_cls = jax.random.normal(jax.random.PRNGKey(1), (2, 197, 512), dtype=jnp.float32)
    out_cls = jax.block_until_ready(embed_features_pallas(x_cls))
    assert bool(jnp.array_equal(out_cls, x_cls))

    print("KERNEL_OK")
</pallas_src>

<mosaic_0001>
module attributes {stable_mosaic.version = 11 : i64} {
  func.func @_identity_kernel(%arg0: i32, %arg1: memref<4x2048xf32, #tpu.memory_space<vmem>>, %arg2: memref<4x2048xf32, #tpu.memory_space<vmem>>) attributes {dimension_semantics = [#tpu.dimension_semantics<parallel>], iteration_bounds = array<i64: 1>, scalar_prefetch = 0 : i64, scratch_operands = 0 : i64, tpu.core_type = #tpu.core_type<tc>, window_params = [{transform_indices = @transform_0, window_bounds = array<i64: 4, 2048>}, {transform_indices = @transform_1, window_bounds = array<i64: 4, 2048>}]} {
    %c0 = arith.constant 0 : index
    %c0_0 = arith.constant 0 : index
    %0 = vector.load %arg1[%c0, %c0_0] : memref<4x2048xf32, #tpu.memory_space<vmem>>, vector<4x2048xf32>
    %c0_1 = arith.constant 0 : index
    %c0_2 = arith.constant 0 : index
    %1 = vector.load %arg2[%c0_1, %c0_2] : memref<4x2048xf32, #tpu.memory_space<vmem>>, vector<4x2048xf32>
    tpu.vector_store %arg2[%c0_1, %c0_2], %0 {strides = array<i32>} : memref<4x2048xf32, #tpu.memory_space<vmem>>, vector<4x2048xf32>,
    return
  }
  func.func @transform_0(%arg0: i32) -> (i32, i32) {
    %c0_i32 = arith.constant 0 : i32
    %c0_i32_0 = arith.constant 0 : i32
    return %arg0, %c0_i32 : i32, i32
  }
  func.func @transform_1(%arg0: i32) -> (i32, i32) {
    %c0_i32 = arith.constant 0 : i32
    %c0_i32_0 = arith.constant 0 : i32
    return %arg0, %c0_i32 : i32, i32
  }
}

</mosaic_0001>

<llo_original>
// kernel: embed_features_pallas.1
$region0: #{embed_features_pallas.1}
  #allocation0 [shape = 'u32[]', space=smem, size = 0x4, offset = 0x4, fixed_abs, tag = 'smem constant byte address 0x4 - core index']
  #allocation1 [shape = 'u32[144,128]{1,0:T(1,128)}', space=vmem, size = 0x12000, scoped, tag = 'internal scratch']
  %s0 = inlined_call_operand.vmem [shape: f32[4,2048], index: 0, kind: input, shape index: {}, may-alias: {0,1}]
  %s1 = inlined_call_operand.vmem [shape: f32[4,2048], index: 1, kind: output, shape index: {}, may-alias: {0,1}]
  %s2 = sld [smem:[#allocation0]]
  $region14: #{embed_features_pallas.1} parent=0
    _
  %s4 = ssub.s32 1, %s2
  %s5 = scalar_select 0, %s4, %s2
  // Predicated region
  $region2: #{embed_features_pallas.1} parent=0 // pred_check
    _
  $region3: #{embed_features_pallas.1} parent=0 // pred_check_branch
    %7 = sbr.rel (0) target = $region5
  $region4: #{embed_features_pallas.1} parent=0 // pred_region
    _
  $region5: #{embed_features_pallas.1} parent=0 // pred_fallthru
    _
  %v8 = vld [vmem:[%s0] sm:$0xff]
  %v9 = vld [vmem:[%s0 + $0x8] sm:$0xff]
  %v10 = vld [vmem:[%s0 + $0x10] sm:$0xff]
  %v11 = vld [vmem:[%s0 + $0x18] sm:$0xff]
  %v12 = vld [vmem:[%s0 + $0x20] sm:$0xff]
  %v13 = vld [vmem:[%s0 + $0x28] sm:$0xff]
  %v14 = vld [vmem:[%s0 + $0x30] sm:$0xff]
  %v15 = vld [vmem:[%s0 + $0x38] sm:$0xff]
  %16 = vst [vmem:[%s1] sm:$0xff] %v8
  %17 = vst [vmem:[%s1 + $0x8] sm:$0xff] %v9
  %18 = vst [vmem:[%s1 + $0x10] sm:$0xff] %v10
  %19 = vst [vmem:[%s1 + $0x18] sm:$0xff] %v11
  %20 = vst [vmem:[%s1 + $0x20] sm:$0xff] %v12
  %21 = vst [vmem:[%s1 + $0x28] sm:$0xff] %v13
  %22 = vst [vmem:[%s1 + $0x30] sm:$0xff] %v14
  %23 = vst [vmem:[%s1 + $0x38] sm:$0xff] %v15
  // Predicated region
  $region6: #{embed_features_pallas.1} parent=0 // pred_check
    _
  $region7: #{embed_features_pallas.1} parent=0 // pred_check_branch
    %25 = sbr.rel (0) target = $region9
  $region8: #{embed_features_pallas.1} parent=0 // pred_region
    _
  $region9: #{embed_features_pallas.1} parent=0 // pred_fallthru
    _
  // Predicated region
  $region10: #{embed_features_pallas.1} parent=0 // pred_check
    _
  $region11: #{embed_features_pallas.1} parent=0 // pred_check_branch
    %27 = sbr.rel (0) target = $region13
  $region12: #{embed_features_pallas.1} parent=0 // pred_region
    _
  $region13: #{embed_features_pallas.1} parent=0 // pred_fallthru
    _

</llo_original>
